<compile_context>
chip_gen: v5e
topology: v5e:2x2
jax: 0.10.0
libtpu: 0.0.40
codegen_flags: <defaults>
</compile_context>

<pallas_src>
import functools
import math

import jax
import jax.numpy as jnp
from jax.experimental import pallas as pl
from jax.experimental.pallas import tpu as pltpu

_LANE = 128
_SUB = 8


def _round_up(x, m):
    return (x + m - 1) // m * m


def _num_tensorcores():
    """Best-effort TensorCore count for the local chip (1 if unknown)."""
    try:
        info = pltpu.get_tpu_info()
    except Exception:
        return 1
    for name in ("num_cores", "core_count", "num_tensorcores",
                 "tensorcore_count", "tensorcores_per_chip", "cores_per_chip"):
        v = getattr(info, name, None)
        if isinstance(v, int) and v > 0:
            return min(int(v), 2)       # current chips have at most 2 TCs
    return 1


def _loss_kernel(yhat_ref, dar_ref, out_ref, *,
                 thres, focal, c_fp, c_fn, n_total, block_rows,
                 steps_per_split, n_full_blocks):
    c = pl.program_id(0)      # TensorCore split (CORE_PARALLEL when nsplit>1)
    i = pl.program_id(1)      # streaming step   ("arbitrary")
    step = c * steps_per_split + i          # UNclamped logical block index
    block_elems = block_rows * _LANE

    @pl.when(i == 0)
    def _():
        out_ref[...] = jnp.zeros_like(out_ref)

    def accumulate(masked):
        y = yhat_ref[...].astype(jnp.float32)
        d = dar_ref[...].astype(jnp.float32)

        # ---- scalar part: L1 (sum of |y - d|) ----
        l1 = jnp.abs(y - d)

        # ---- binary part: raw boolean compares, no f32 bit tensors ----
        ygt = y > thres
        dgt = d > thres
        if focal:
            # focal_loss(yb, db) with yb, db in {0,1} collapses to two
            # constants: alpha_t * bce_with_logits * (1 - p_t)^2 is nonzero
            # only where the bits disagree, and (1-p_t)^2 == 1 there.
            loss = jnp.where(ygt & (~dgt), c_fp,
                             jnp.where((~ygt) & dgt, c_fn, 0.0))
        else:
            # F.binary_cross_entropy on {0,1} "probabilities": PyTorch clamps
            # log(0) at -100, so per-element loss is 100 where bits disagree.
            loss = jnp.where(ygt != dgt, 100.0, 0.0)

        if masked:
            # Only tail / clamped-duplicate blocks pay for the iota + mask.
            rem = n_total - step * block_elems        # may be <= 0 (duplicates)
            idx = (jax.lax.broadcasted_iota(jnp.int32, (block_rows, _LANE), 0)
                   * _LANE
                   + jax.lax.broadcasted_iota(jnp.int32, (block_rows, _LANE), 1))
            valid = idx < rem
            l1 = jnp.where(valid, l1, 0.0)
            loss = jnp.where(valid, loss, 0.0)

        # Per-(sublane, lane) partial sums accumulated directly into the
        # resident output block (pure VPU adds, no per-step XLU reduce).
        out_ref[0, 0, :, :] += l1.reshape(-1, _SUB, _LANE).sum(axis=0)
        out_ref[0, 1, :, :] += loss.reshape(-1, _SUB, _LANE).sum(axis=0)

    needs_mask = step >= n_full_blocks

    @pl.when(jnp.logical_not(needs_mask))
    def _():
        accumulate(False)

    @pl.when(needs_mask)
    def _():
        accumulate(True)


def combined_scalar_binary_loss(y_hat_prime, dardar, *,
                                target_transform=lambda x: x,
                                cloud_thres=0.0, binary_weight=1.0,
                                focal=False, focal_alpha=0.9,
                                max_block_rows=2048):
    """Pallas implementation of CombinedScalarBinaryLoss.forward."""
    thres = float(target_transform(cloud_thres))
    # NOTE: the PyTorch module hard-codes self.focal_alpha = 0.9 regardless of
    # the constructor argument; reproduce that behavior.
    focal_alpha = 0.9
    # Collapsed focal constants (bits disagree is the only nonzero case):
    #   predict 1 / target 0: (1-alpha) * (1 + log1p(e^-1))
    #   predict 0 / target 1: alpha * log(2)
    c_fp = float((1.0 - focal_alpha) * (1.0 + math.log1p(math.exp(-1.0))))
    c_fn = float(focal_alpha * math.log(2.0))

    n_total = int(y_hat_prime.size)
    if n_total <= 0:
        raise ValueError("empty input")
    if n_total >= 2 ** 31:
        # In-kernel index math is int32.
        raise ValueError("inputs with >= 2**31 elements are not supported")

    y = jnp.ravel(y_hat_prime)            # native dtype; cast happens in-kernel
    d = jnp.ravel(dardar)

    # Pure reshape (no copy) when numel % 128 == 0; only lane-ragged sizes pad
    # by < 128 elements (padded slots are masked in-kernel anyway).
    # TODO(synk): for lane-ragged sizes jnp.pad still copies both tensors; a
    # 1-D-input kernel or a manual-DMA tail pass would avoid the O(N) copy.
    pad = (-n_total) % _LANE
    if pad:
        y = jnp.pad(y, (0, pad))
        d = jnp.pad(d, (0, pad))
    rows = (n_total + pad) // _LANE
    y2 = y.reshape(rows, _LANE)
    d2 = d.reshape(rows, _LANE)

    max_block_rows = max(_round_up(int(max_block_rows), _SUB), _SUB)
    block_rows = min(max_block_rows, _round_up(rows, _SUB))
    block_elems = block_rows * _LANE
    total_steps = pl.cdiv(rows, block_rows)
    n_full_blocks = n_total // block_elems     # blocks with no masking needed

    # Split the row range across TensorCores only on multi-core chips (v7x);
    # on single-core chips the split would only add clamped duplicate blocks.
    num_cores = _num_tensorcores()
    nsplit = num_cores if (num_cores > 1 and total_steps >= num_cores) else 1
    steps_per_split = pl.cdiv(total_steps, nsplit)
    last_block = total_steps - 1

    def in_map(c, i):
        # Clamp so the DMA never walks past the array; clamped duplicate
        # blocks contribute nothing because the mask uses the UNclamped index.
        return (jnp.minimum(c * steps_per_split + i, last_block), 0)

    kernel = functools.partial(
        _loss_kernel, thres=thres, focal=bool(focal), c_fp=c_fp, c_fn=c_fn,
        n_total=n_total, block_rows=block_rows,
        steps_per_split=steps_per_split, n_full_blocks=n_full_blocks)

    if nsplit > 1:
        dims = (pltpu.CORE_PARALLEL, pltpu.ARBITRARY)
    else:
        dims = ("arbitrary", "arbitrary")

    partials = pl.pallas_call(
        kernel,
        out_shape=jax.ShapeDtypeStruct((nsplit, 2, _SUB, _LANE), jnp.float32),
        grid_spec=pltpu.PrefetchScalarGridSpec(
            num_scalar_prefetch=0,
            grid=(nsplit, steps_per_split),
            in_specs=[pl.BlockSpec((block_rows, _LANE), in_map),
                      pl.BlockSpec((block_rows, _LANE), in_map)],
            out_specs=pl.BlockSpec((1, 2, _SUB, _LANE),
                                   lambda c, i: (c, 0, 0, 0))),
        compiler_params=pltpu.CompilerParams(
            dimension_semantics=dims,
            vmem_limit_bytes=32 * 1024 * 1024),
    )(y2, d2)

    # Tiny epilogue reduction of the lane-dense partials (XLA side).
    sums = jnp.sum(partials, axis=(0, 2, 3))          # [l1_sum, binary_sum]
    inv_n = jnp.float32(1.0 / n_total)
    scalar_loss = sums[0] * inv_n
    binary_loss = sums[1] * inv_n
    loss = binary_weight * binary_loss + scalar_loss
    return {'loss': loss, 'l1_loss': scalar_loss, 'binary_loss': binary_loss}


def _reference(y_hat, dardar, thres=0.0, binary_weight=1.0, focal=False,
               focal_alpha=0.9, gamma=2.0):
    """Pure-JAX reference mirroring the PyTorch module (transcendental form)."""
    y = jnp.asarray(y_hat, jnp.float32)
    d = jnp.asarray(dardar, jnp.float32)
    l1 = jnp.mean(jnp.abs(y - d))
    yb = (y > thres).astype(jnp.float32)
    db = (d > thres).astype(jnp.float32)
    if focal:
        ce = jnp.maximum(yb, 0.0) - yb * db + jnp.log1p(jnp.exp(-jnp.abs(yb)))
        p_t = yb * db + (1.0 - yb) * (1.0 - db)
        bl = ce * (1.0 - p_t) ** gamma
        alpha_t = focal_alpha * db + (1.0 - focal_alpha) * (1.0 - db)
        bl = jnp.mean(alpha_t * bl)
    else:
        bl = jnp.mean(100.0 * (yb != db).astype(jnp.float32))
    return binary_weight * bl + l1, l1, bl


def _check(out, y_hat, dardar, focal):
    ref_loss, ref_l1, ref_bin = _reference(y_hat, dardar, focal=focal)
    assert jnp.allclose(out['l1_loss'], ref_l1, rtol=1e-5, atol=1e-5)
    assert jnp.allclose(out['binary_loss'], ref_bin, rtol=1e-5, atol=1e-5)
    assert jnp.allclose(out['loss'], ref_loss, rtol=1e-5, atol=1e-5)


if __name__ == "__main__":
    key = jax.random.PRNGKey(0)
    k1, k2, k3, k4, k5, k6 = jax.random.split(key, 6)

    # 1) standard (cross-entropy) and focal paths on the canonical small shape
    #    (numel = 2048 -> no-pad fast path, single block).
    shape = (2, 4, 16, 16)
    y_hat = jax.random.normal(k1, shape, dtype=jnp.float32)
    dardar = jax.random.normal(k2, shape, dtype=jnp.float32)

    out = combined_scalar_binary_loss(y_hat, dardar, focal=False)
    jax.block_until_ready(out['loss'])
    _check(out, y_hat, dardar, focal=False)

    out_f = combined_scalar_binary_loss(y_hat, dardar, focal=True)
    jax.block_until_ready(out_f['loss'])
    _check(out_f, y_hat, dardar, focal=True)

    # 2) multi-step grid exercising both the unmasked interior fast path and a
    #    masked (partial) tail block: 192 rows, block_rows=40 -> 4 full + 1 tail.
    shape2 = (2, 3, 32, 128)
    y2 = jax.random.normal(k3, shape2, dtype=jnp.float32)
    d2 = jax.random.normal(k4, shape2, dtype=jnp.float32)
    out2 = combined_scalar_binary_loss(y2, d2, focal=True, max_block_rows=40)
    jax.block_until_ready(out2['loss'])
    _check(out2, y2, d2, focal=True)

    # 3) lane-ragged size (numel % 128 != 0) -> small pad + in-kernel masking.
    shape3 = (3, 5, 7, 11)
    y3 = jax.random.normal(k5, shape3, dtype=jnp.float32)
    d3 = jax.random.normal(k6, shape3, dtype=jnp.float32)
    out3 = combined_scalar_binary_loss(y3, d3, focal=False)
    jax.block_until_ready(out3['loss'])
    _check(out3, y3, d3, focal=False)

    # 4) bf16 inputs (native-dtype streaming, in-kernel f32 cast).
    yb16 = y_hat.astype(jnp.bfloat16)
    db16 = dardar.astype(jnp.bfloat16)
    out4 = combined_scalar_binary_loss(yb16, db16, focal=True)
    jax.block_until_ready(out4['loss'])
    _check(out4, yb16, db16, focal=True)

    print("KERNEL_OK")
</pallas_src>

<mosaic_0001>
module attributes {stable_mosaic.version = 11 : i64} {
  func.func @_loss_kernel(%arg0: i32, %arg1: i32, %arg2: memref<16x128xf32, #tpu.memory_space<vmem>>, %arg3: memref<16x128xf32, #tpu.memory_space<vmem>>, %arg4: memref<1x2x8x128xf32, #tpu.memory_space<vmem>>) attributes {dimension_semantics = [#tpu.dimension_semantics<arbitrary>, #tpu.dimension_semantics<arbitrary>], iteration_bounds = array<i64: 1, 1>, scalar_prefetch = 0 : i64, scratch_operands = 0 : i64, tpu.core_type = #tpu.core_type<tc>, window_params = [{transform_indices = @transform_0, window_bounds = array<i64: 16, 128>}, {transform_indices = @transform_1, window_bounds = array<i64: 16, 128>}, {transform_indices = @transform_2, window_bounds = array<i64: 1, 2, 8, 128>}]} {
    %c1_i32 = arith.constant 1 : i32
    %0 = arith.muli %arg0, %c1_i32 : i32
    %1 = arith.addi %0, %arg1 : i32
    %c0_i32 = arith.constant 0 : i32
    %2 = arith.cmpi eq, %arg1, %c0_i32 : i32
    %3 = arith.extui %2 : i1 to i32
    %c0_i32_0 = arith.constant 0 : i32
    %4 = arith.cmpi ne, %3, %c0_i32_0 : i32
    scf.if %4 {
      %cst = arith.constant 0.000000e+00 : f32
      %11 = vector.broadcast %cst : f32 to vector<1x2x8x128xf32>
      %c0 = arith.constant 0 : index
      %c0_4 = arith.constant 0 : index
      %c0_5 = arith.constant 0 : index
      %c0_6 = arith.constant 0 : index
      %12 = vector.load %arg4[%c0, %c0_4, %c0_5, %c0_6] : memref<1x2x8x128xf32, #tpu.memory_space<vmem>>, vector<1x2x8x128xf32>
      tpu.vector_store %arg4[%c0, %c0_4, %c0_5, %c0_6], %11 {strides = array<i32>} : memref<1x2x8x128xf32, #tpu.memory_space<vmem>>, vector<1x2x8x128xf32>,
    } else {
    }
    %c1_i32_1 = arith.constant 1 : i32
    %5 = arith.cmpi sge, %1, %c1_i32_1 : i32
    %true = arith.constant true
    %6 = arith.xori %5, %true : i1
    %7 = arith.extui %6 : i1 to i32
    %c0_i32_2 = arith.constant 0 : i32
    %8 = arith.cmpi ne, %7, %c0_i32_2 : i32
    scf.if %8 {
      %c0 = arith.constant 0 : index
      %c0_4 = arith.constant 0 : index
      %11 = vector.load %arg2[%c0, %c0_4] : memref<16x128xf32, #tpu.memory_space<vmem>>, vector<16x128xf32>
      %c0_5 = arith.constant 0 : index
      %c0_6 = arith.constant 0 : index
      %12 = vector.load %arg3[%c0_5, %c0_6] : memref<16x128xf32, #tpu.memory_space<vmem>>, vector<16x128xf32>
      %13 = arith.subf %11, %12 : vector<16x128xf32>
      %14 = math.absf %13 : vector<16x128xf32>
      %cst = arith.constant 0.000000e+00 : f32
      %15 = vector.broadcast %cst : f32 to vector<16x128xf32>
      %16 = arith.cmpf ogt, %11, %15 : vector<16x128xf32>
      %cst_7 = arith.constant 0.000000e+00 : f32
      %17 = vector.broadcast %cst_7 : f32 to vector<16x128xf32>
      %18 = arith.cmpf ogt, %12, %17 : vector<16x128xf32>
      %19 = arith.xori %16, %18 : vector<16x128xi1>
      %cst_8 = arith.constant 1.000000e+02 : f32
      %cst_9 = arith.constant 0.000000e+00 : f32
      %20 = vector.broadcast %cst_8 : f32 to vector<16x128xf32>
      %21 = vector.broadcast %cst_9 : f32 to vector<16x128xf32>
      %22 = arith.select %19, %20, %21 : vector<16x128xi1>, vector<16x128xf32>
      %c0_10 = arith.constant 0 : index
      %c0_11 = arith.constant 0 : index
      %c0_12 = arith.constant 0 : index
      %c0_13 = arith.constant 0 : index
      %23 = vector.load %arg4[%c0_10, %c0_11, %c0_12, %c0_13] : memref<1x2x8x128xf32, #tpu.memory_space<vmem>>, vector<1x1x8x128xf32>
      %24 = vector.shape_cast %23 : vector<1x1x8x128xf32> to vector<8x128xf32>
      %25 = vector.shape_cast %14 : vector<16x128xf32> to vector<2x8x128xf32>
      %cst_14 = arith.constant dense<0.000000e+00> : vector<8x128xf32>
      %26 = vector.multi_reduction <add>, %25, %cst_14 [0] : vector<2x8x128xf32> to vector<8x128xf32>
      %27 = arith.addf %24, %26 : vector<8x128xf32>
      %c0_15 = arith.constant 0 : index
      %c0_16 = arith.constant 0 : index
      %c0_17 = arith.constant 0 : index
      %c0_18 = arith.constant 0 : index
      %28 = vector.load %arg4[%c0_15, %c0_16, %c0_17, %c0_18] : memref<1x2x8x128xf32, #tpu.memory_space<vmem>>, vector<1x1x8x128xf32>
      %29 = vector.shape_cast %28 : vector<1x1x8x128xf32> to vector<8x128xf32>
      %30 = vector.shape_cast %27 : vector<8x128xf32> to vector<1x1x8x128xf32>
      tpu.vector_store %arg4[%c0_15, %c0_16, %c0_17, %c0_18], %30 {strides = array<i32>} : memref<1x2x8x128xf32, #tpu.memory_space<vmem>>, vector<1x1x8x128xf32>,
      %c0_19 = arith.constant 0 : index
      %c1 = arith.constant 1 : index
      %c0_20 = arith.constant 0 : index
      %c0_21 = arith.constant 0 : index
      %31 = vector.load %arg4[%c0_19, %c1, %c0_20, %c0_21] : memref<1x2x8x128xf32, #tpu.memory_space<vmem>>, vector<1x1x8x128xf32>
      %32 = vector.shape_cast %31 : vector<1x1x8x128xf32> to vector<8x128xf32>
      %33 = vector.shape_cast %22 : vector<16x128xf32> to vector<2x8x128xf32>
      %cst_22 = arith.constant dense<0.000000e+00> : vector<8x128xf32>
      %34 = vector.multi_reduction <add>, %33, %cst_22 [0] : vector<2x8x128xf32> to vector<8x128xf32>
      %35 = arith.addf %32, %34 : vector<8x128xf32>
      %c0_23 = arith.constant 0 : index
      %c1_24 = arith.constant 1 : index
      %c0_25 = arith.constant 0 : index
      %c0_26 = arith.constant 0 : index
      %36 = vector.load %arg4[%c0_23, %c1_24, %c0_25, %c0_26] : memref<1x2x8x128xf32, #tpu.memory_space<vmem>>, vector<1x1x8x128xf32>
      %37 = vector.shape_cast %36 : vector<1x1x8x128xf32> to vector<8x128xf32>
      %38 = vector.shape_cast %35 : vector<8x128xf32> to vector<1x1x8x128xf32>
      tpu.vector_store %arg4[%c0_23, %c1_24, %c0_25, %c0_26], %38 {strides = array<i32>} : memref<1x2x8x128xf32, #tpu.memory_space<vmem>>, vector<1x1x8x128xf32>,
    } else {
    }
    %9 = arith.extui %5 : i1 to i32
    %c0_i32_3 = arith.constant 0 : i32
    %10 = arith.cmpi ne, %9, %c0_i32_3 : i32
    scf.if %10 {
      %c0 = arith.constant 0 : index
      %c0_4 = arith.constant 0 : index
      %11 = vector.load %arg2[%c0, %c0_4] : memref<16x128xf32, #tpu.memory_space<vmem>>, vector<16x128xf32>
      %c0_5 = arith.constant 0 : index
      %c0_6 = arith.constant 0 : index
      %12 = vector.load %arg3[%c0_5, %c0_6] : memref<16x128xf32, #tpu.memory_space<vmem>>, vector<16x128xf32>
      %13 = arith.subf %11, %12 : vector<16x128xf32>
      %14 = math.absf %13 : vector<16x128xf32>
      %cst = arith.constant 0.000000e+00 : f32
      %15 = vector.broadcast %cst : f32 to vector<16x128xf32>
      %16 = arith.cmpf ogt, %11, %15 : vector<16x128xf32>
      %cst_7 = arith.constant 0.000000e+00 : f32
      %17 = vector.broadcast %cst_7 : f32 to vector<16x128xf32>
      %18 = arith.cmpf ogt, %12, %17 : vector<16x128xf32>
      %19 = arith.xori %16, %18 : vector<16x128xi1>
      %cst_8 = arith.constant 1.000000e+02 : f32
      %cst_9 = arith.constant 0.000000e+00 : f32
      %20 = vector.broadcast %cst_8 : f32 to vector<16x128xf32>
      %21 = vector.broadcast %cst_9 : f32 to vector<16x128xf32>
      %22 = arith.select %19, %20, %21 : vector<16x128xi1>, vector<16x128xf32>
      %c2048_i32 = arith.constant 2048 : i32
      %23 = arith.muli %1, %c2048_i32 : i32
      %c2048_i32_10 = arith.constant 2048 : i32
      %24 = arith.subi %c2048_i32_10, %23 : i32
      %25 = tpu.iota {dimensions = array<i32: 0>} : vector<16x128xi32>
      %c128_i32 = arith.constant 128 : i32
      %26 = vector.broadcast %c128_i32 : i32 to vector<16x128xi32>
      %27 = arith.muli %25, %26 : vector<16x128xi32>
      %28 = tpu.iota {dimensions = array<i32: 1>} : vector<16x128xi32>
      %29 = arith.addi %27, %28 : vector<16x128xi32>
      %30 = vector.broadcast %24 : i32 to vector<16x128xi32>
      %31 = arith.cmpi slt, %29, %30 : vector<16x128xi32>
      %cst_11 = arith.constant 0.000000e+00 : f32
      %32 = vector.broadcast %cst_11 : f32 to vector<16x128xf32>
      %33 = arith.select %31, %14, %32 : vector<16x128xi1>, vector<16x128xf32>
      %cst_12 = arith.constant 0.000000e+00 : f32
      %34 = vector.broadcast %cst_12 : f32 to vector<16x128xf32>
      %35 = arith.select %31, %22, %34 : vector<16x128xi1>, vector<16x128xf32>
      %c0_13 = arith.constant 0 : index
      %c0_14 = arith.constant 0 : index
      %c0_15 = arith.constant 0 : index
      %c0_16 = arith.constant 0 : index
      %36 = vector.load %arg4[%c0_13, %c0_14, %c0_15, %c0_16] : memref<1x2x8x128xf32, #tpu.memory_space<vmem>>, vector<1x1x8x128xf32>
      %37 = vector.shape_cast %36 : vector<1x1x8x128xf32> to vector<8x128xf32>
      %38 = vector.shape_cast %33 : vector<16x128xf32> to vector<2x8x128xf32>
      %cst_17 = arith.constant dense<0.000000e+00> : vector<8x128xf32>
      %39 = vector.multi_reduction <add>, %38, %cst_17 [0] : vector<2x8x128xf32> to vector<8x128xf32>
      %40 = arith.addf %37, %39 : vector<8x128xf32>
      %c0_18 = arith.constant 0 : index
      %c0_19 = arith.constant 0 : index
      %c0_20 = arith.constant 0 : index
      %c0_21 = arith.constant 0 : index
      %41 = vector.load %arg4[%c0_18, %c0_19, %c0_20, %c0_21] : memref<1x2x8x128xf32, #tpu.memory_space<vmem>>, vector<1x1x8x128xf32>
      %42 = vector.shape_cast %41 : vector<1x1x8x128xf32> to vector<8x128xf32>
      %43 = vector.shape_cast %40 : vector<8x128xf32> to vector<1x1x8x128xf32>
      tpu.vector_store %arg4[%c0_18, %c0_19, %c0_20, %c0_21], %43 {strides = array<i32>} : memref<1x2x8x128xf32, #tpu.memory_space<vmem>>, vector<1x1x8x128xf32>,
      %c0_22 = arith.constant 0 : index
      %c1 = arith.constant 1 : index
      %c0_23 = arith.constant 0 : index
      %c0_24 = arith.constant 0 : index
      %44 = vector.load %arg4[%c0_22, %c1, %c0_23, %c0_24] : memref<1x2x8x128xf32, #tpu.memory_space<vmem>>, vector<1x1x8x128xf32>
      %45 = vector.shape_cast %44 : vector<1x1x8x128xf32> to vector<8x128xf32>
      %46 = vector.shape_cast %35 : vector<16x128xf32> to vector<2x8x128xf32>
      %cst_25 = arith.constant dense<0.000000e+00> : vector<8x128xf32>
      %47 = vector.multi_reduction <add>, %46, %cst_25 [0] : vector<2x8x128xf32> to vector<8x128xf32>
      %48 = arith.addf %45, %47 : vector<8x128xf32>
      %c0_26 = arith.constant 0 : index
      %c1_27 = arith.constant 1 : index
      %c0_28 = arith.constant 0 : index
      %c0_29 = arith.constant 0 : index
      %49 = vector.load %arg4[%c0_26, %c1_27, %c0_28, %c0_29] : memref<1x2x8x128xf32, #tpu.memory_space<vmem>>, vector<1x1x8x128xf32>
      %50 = vector.shape_cast %49 : vector<1x1x8x128xf32> to vector<8x128xf32>
      %51 = vector.shape_cast %48 : vector<8x128xf32> to vector<1x1x8x128xf32>
      tpu.vector_store %arg4[%c0_26, %c1_27, %c0_28, %c0_29], %51 {strides = array<i32>} : memref<1x2x8x128xf32, #tpu.memory_space<vmem>>, vector<1x1x8x128xf32>,
    } else {
    }
    return
  }
  func.func @transform_0(%arg0: i32, %arg1: i32) -> (i32, i32) {
    %c1_i32 = arith.constant 1 : i32
    %0 = arith.muli %arg0, %c1_i32 : i32
    %1 = arith.addi %0, %arg1 : i32
    %c0_i32 = arith.constant 0 : i32
    %2 = arith.minsi %1, %c0_i32 : i32
    %c0_i32_0 = arith.constant 0 : i32
    %c0_i32_1 = arith.constant 0 : i32
    return %2, %c0_i32_0 : i32, i32
  }
  func.func @transform_1(%arg0: i32, %arg1: i32) -> (i32, i32) {
    %c1_i32 = arith.constant 1 : i32
    %0 = arith.muli %arg0, %c1_i32 : i32
    %1 = arith.addi %0, %arg1 : i32
    %c0_i32 = arith.constant 0 : i32
    %2 = arith.minsi %1, %c0_i32 : i32
    %c0_i32_0 = arith.constant 0 : i32
    %c0_i32_1 = arith.constant 0 : i32
    return %2, %c0_i32_0 : i32, i32
  }
  func.func @transform_2(%arg0: i32, %arg1: i32) -> (i32, i32, i32, i32) {
    %c0_i32 = arith.constant 0 : i32
    %c0_i32_0 = arith.constant 0 : i32
    %c0_i32_1 = arith.constant 0 : i32
    %c0_i32_2 = arith.constant 0 : i32
    return %arg0, %c0_i32, %c0_i32_0, %c0_i32_1 : i32, i32, i32, i32
  }
}

</mosaic_0001>

<llo_original>
// kernel: tpu_custom_call.1
$region0: #{tpu_custom_call.1}
  #allocation0 [shape = 'u32[]', space=smem, size = 0x4, offset = 0x4, fixed_abs, tag = 'smem constant byte address 0x4 - core index']
  #allocation1 [shape = 'u32[72,128]{1,0:T(1,128)}', space=vmem, size = 0x9000, scoped, tag = 'internal scratch']
  %s0 = inlined_call_operand.hbm [shape: f32[16,128], index: 0, kind: input, shape index: {}]
  %s1 = inlined_call_operand.hbm [shape: f32[16,128], index: 1, kind: input, shape index: {}]
  %s2 = inlined_call_operand.hbm [shape: f32[1,2,8,128], index: 2, kind: output, shape index: {}]
  %s3 = sld [smem:[#allocation0]]
  $region38: #{tpu_custom_call.1} parent=0
    _
  %s5 = ssub.s32 1, %s3
  %s6 = scalar_select 0, %s5, %s3
  $region1: #{tpu_custom_call.1} parent=0
    #allocation2 [shape = 'u8[8192]{0}', space=vmem, size = 0x2000, scoped, tag = 'input window, operand 0, single buffered']
    #allocation3 [shape = 's32[1]{0}', space=sflag, size = 0x4, scoped, tag = 'scoped memory for tpu_custom_call.1']
    #allocation4 [shape = 's32[1]{0}', space=sflag, size = 0x4, scoped, tag = 'scoped memory for tpu_custom_call.1']
    #allocation5 [shape = 'u8[8192]{0}', space=vmem, size = 0x2000, scoped, tag = 'input window, operand 1, single buffered']
    #allocation6 [shape = 's32[1]{0}', space=sflag, size = 0x4, scoped, tag = 'scoped memory for tpu_custom_call.1']
    #allocation7 [shape = 'u8[8192]{0}', space=vmem, size = 0x2000, scoped, tag = 'output window, operand 0, single buffered']
    %7 = vsyncpa [#allocation3], 0
    %8 = vsyncpa [#allocation6], 0
    %9 = vsyncpa [#allocation4], 0
    // Predicated region
    $region2: #{tpu_custom_call.1} parent=1 // pred_check
      _
    $region3: #{tpu_custom_call.1} parent=1 // pred_check_branch
      %11 = sbr.rel (0) target = $region5
    $region4: #{tpu_custom_call.1} parent=1 // pred_region
      %s12 = sadd.s32 0, 0
      %p13 = scmp.lt.s32.totalorder %s12, 0
      %s14 = scalar_select %p13, %s12, 0
      %s15 = smul.u32 2, %s14
      %17 = vsyncadd [#allocation3], 0
      %s18 = smul.addr %s15, 8
      %s19 = scalar_lea.hbm %s0, %s18
      %s20 = sshll.u32 %s19, 4
      %s21 = int_to_ptr.hbm [resolvable:$true] %s20
      %s22 = sshll.u32 [#allocation2], 4
      %s23 = int_to_ptr.vmem [resolvable:$true] %s22
      %28 = dma.hbm_to_vmem [thread:$0]  %s21, 256, %s23, [#allocation3], 128, 128, 8
    $region5: #{tpu_custom_call.1} parent=1 // pred_fallthru
      _
    // Predicated region
    $region6: #{tpu_custom_call.1} parent=1 // pred_check
      _
    $region7: #{tpu_custom_call.1} parent=1 // pred_check_branch
      %30 = sbr.rel (0) target = $region9
    $region8: #{tpu_custom_call.1} parent=1 // pred_region
      %s31 = sadd.s32 0, 0
      %p32 = scmp.lt.s32.totalorder %s31, 0
      %s33 = scalar_select %p32, %s31, 0
      %s34 = smul.u32 2, %s33
      %36 = vsyncadd [#allocation6], 0
      %s37 = smul.addr %s34, 8
      %s38 = scalar_lea.hbm %s1, %s37
      %s39 = sshll.u32 %s38, 4
      %s40 = int_to_ptr.hbm [resolvable:$true] %s39
      %s41 = sshll.u32 [#allocation5], 4
      %s42 = int_to_ptr.vmem [resolvable:$true] %s41
      %47 = dma.hbm_to_vmem [thread:$0]  %s40, 256, %s42, [#allocation6], 128, 128, 8
    $region9: #{tpu_custom_call.1} parent=1 // pred_fallthru
      _
    // Predicated region
    $region10: #{tpu_custom_call.1} parent=1 // pred_check
      _
    $region11: #{tpu_custom_call.1} parent=1 // pred_check_branch
      %49 = sbr.rel (0) target = $region13
    $region12: #{tpu_custom_call.1} parent=1 // pred_region
      %51 = dma.done [#allocation3], 256
    $region13: #{tpu_custom_call.1} parent=1 // pred_fallthru
      _
    // Predicated region
    $region14: #{tpu_custom_call.1} parent=1 // pred_check
      _
    $region15: #{tpu_custom_call.1} parent=1 // pred_check_branch
      %53 = sbr.rel (0) target = $region17
    $region16: #{tpu_custom_call.1} parent=1 // pred_region
      %55 = dma.done [#allocation6], 256
    $region17: #{tpu_custom_call.1} parent=1 // pred_fallthru
      _
    %s56 = sadd.s32 0, 0
    %p57 = scmp.lt.s32.totalorder %s56, 0
    %s58 = scalar_select %p57, %s56, 0
    %s59 = smul.u32 2, %s58
    %s60 = sadd.s32 0, 0
    %p61 = scmp.lt.s32.totalorder %s60, 0
    %s62 = scalar_select %p61, %s60, 0
    %s63 = smul.u32 2, %s62
    %s64 = sadd.s32 0, 0
    %p65 = scmp.eq.s32.totalorder 0, 0
    // Predicated region
    $region18: #{tpu_custom_call.1} parent=1 // pred_check
      %p66 = pneg %p65
    $region19: #{tpu_custom_call.1} parent=1 // pred_check_branch
      %68 = sbr.rel (%p66) target = $region21
    $region20: #{tpu_custom_call.1} parent=1 // pred_region
      %69 = vst [vmem:[#allocation7] sm:$0xff] 0.0
      %70 = vst [vmem:[#allocation7 + $0x8] sm:$0xff] 0.0
    $region21: #{tpu_custom_call.1} parent=1 // pred_fallthru
      _
    %p71 = scmp.ge.s32.totalorder %s64, 1
    %p72 = scmp.lt.s32.totalorder %s64, 1
    // Predicated region
    $region22: #{tpu_custom_call.1} parent=1 // pred_check
      %p73 = pneg %p72
    $region23: #{tpu_custom_call.1} parent=1 // pred_check_branch
      %75 = sbr.rel (%p73) target = $region25
    $region24: #{tpu_custom_call.1} parent=1 // pred_region
      %v76 = vld [vmem:[#allocation2] sm:$0xff]
      %v77 = vld [vmem:[#allocation2 + $0x8] sm:$0xff]
      %v78 = vld [vmem:[#allocation5] sm:$0xff]
      %v79 = vld [vmem:[#allocation5 + $0x8] sm:$0xff]
      %v80 = vsub.f32 %v76, %v78
      %v81 = vsub.f32 %v77, %v79
      %v82 = vand.u32 2147483647, %v80
      %v83 = vand.u32 2147483647, %v81
      %vm84 = vcmp.gt.f32.partialorder %v76, 0.0
      %vm85 = vcmp.gt.f32.partialorder %v77, 0.0
      %vm86 = vcmp.gt.f32.partialorder %v78, 0.0
      %vm87 = vcmp.gt.f32.partialorder %v79, 0.0
      %vm88 = vmxor %vm84, %vm86
      %vm89 = vmxor %vm85, %vm87
      %v90 = vsel %vm88, 100.0, 0.0
      %v91 = vsel %vm89, 100.0, 0.0
      %v92 = vld [vmem:[#allocation7] sm:$0xff]
      %v93 = vadd.f32 %v82, %v83
      %v94 = vadd.f32 %v92, %v93
      %95 = vst [vmem:[#allocation7] sm:$0xff] %v94
      %s96 = scalar_lea.vmem [#allocation7], 8
      %v97 = vld [vmem:[%s96] sm:$0xff]
      %v98 = vadd.f32 %v90, %v91
      %v99 = vadd.f32 %v97, %v98
      %100 = vst [vmem:[%s96] sm:$0xff] %v99
    $region25: #{tpu_custom_call.1} parent=1 // pred_fallthru
      _
    // Predicated region
    $region26: #{tpu_custom_call.1} parent=1 // pred_check
      %p101 = pneg %p71
    $region27: #{tpu_custom_call.1} parent=1 // pred_check_branch
      %103 = sbr.rel (%p101) target = $region29
    $region28: #{tpu_custom_call.1} parent=1 // pred_region
      %v104 = vld [vmem:[#allocation2] sm:$0xff]
      %v105 = vld [vmem:[#allocation2 + $0x8] sm:$0xff]
      %v106 = vld [vmem:[#allocation5] sm:$0xff]
      %v107 = vld [vmem:[#allocation5 + $0x8] sm:$0xff]
      %v108 = vsub.f32 %v104, %v106
      %v109 = vsub.f32 %v105, %v107
      %v110 = vand.u32 2147483647, %v108
      %v111 = vand.u32 2147483647, %v109
      %vm112 = vcmp.gt.f32.partialorder %v104, 0.0
      %vm113 = vcmp.gt.f32.partialorder %v105, 0.0
      %vm114 = vcmp.gt.f32.partialorder %v106, 0.0
      %vm115 = vcmp.gt.f32.partialorder %v107, 0.0
      %vm116 = vmxor %vm112, %vm114
      %vm117 = vmxor %vm113, %vm115
      %v118 = vsel %vm116, 100.0, 0.0
      %v119 = vsel %vm117, 100.0, 0.0
      %s120 = smul.u32 %s64, 2048
      %s121 = ssub.s32 2048, %s120
      %v122 = vlaneseq
      %v123 = vshrl.u32 %v122, 7
      %v124 = vadd.s32 %v123, 8
      %v125 = vmul.u32 %v123, 128
      %v126 = vmul.u32 %v124, 128
      %v127 = vlaneseq
      %v128 = vand.u32 %v127, 127
      %v129 = vadd.s32 %v125, %v128
      %v130 = vadd.s32 %v126, %v128
      %v131 = vstv %s121
      %vm132 = vcmp.lt.s32.totalorder %v129, %v131
      %vm133 = vcmp.lt.s32.totalorder %v130, %v131
      %v134 = vsel %vm132, %v110, 0.0
      %v135 = vsel %vm133, %v111, 0.0
      %v136 = vsel %vm132, %v118, 0.0
      %v137 = vsel %vm133, %v119, 0.0
      %v138 = vld [vmem:[#allocation7] sm:$0xff]
      %v139 = vadd.f32 %v134, %v135
      %v140 = vadd.f32 %v138, %v139
      %141 = vst [vmem:[#allocation7] sm:$0xff] %v140
      %s142 = scalar_lea.vmem [#allocation7], 8
      %v143 = vld [vmem:[%s142] sm:$0xff]
      %v144 = vadd.f32 %v136, %v137
      %v145 = vadd.f32 %v143, %v144
      %146 = vst [vmem:[%s142] sm:$0xff] %v145
    $region29: #{tpu_custom_call.1} parent=1 // pred_fallthru
      _
    // Predicated region
    $region30: #{tpu_custom_call.1} parent=1 // pred_check
      _
    $region31: #{tpu_custom_call.1} parent=1 // pred_check_branch
      %148 = sbr.rel (0) target = $region33
    $region32: #{tpu_custom_call.1} parent=1 // pred_region
      %150 = vsyncadd [#allocation4], 0
      %s151 = sshll.u32 [#allocation7], 4
      %s152 = int_to_ptr.vmem [resolvable:$true] %s151
      %s153 = sshll.u32 %s2, 4
      %s154 = int_to_ptr.hbm [resolvable:$true] %s153
      %159 = dma.vmem_to_hbm [thread:$0]  %s152, 256, %s154, [#allocation4], 128, 128, 8
    $region33: #{tpu_custom_call.1} parent=1 // pred_fallthru
      _
    // Predicated region
    $region34: #{tpu_custom_call.1} parent=1 // pred_check
      _
    $region35: #{tpu_custom_call.1} parent=1 // pred_check_branch
      %161 = sbr.rel (0) target = $region37
    $region36: #{tpu_custom_call.1} parent=1 // pred_region
      %163 = dma.done [#allocation4], 256
    $region37: #{tpu_custom_call.1} parent=1 // pred_fallthru
      _
    %164 = vsyncpa [#allocation3], 1
    %165 = vsyncpa [#allocation6], 1
    %166 = vsyncpa [#allocation4], 1

</llo_original>
